<compile_context>
chip_gen: v7x
topology: tpu7x:2x2x1
jax: 0.10.0
libtpu: 0.0.40
codegen_flags: <defaults>
</compile_context>

<pallas_src>
import jax
import jax.numpy as jnp
from jax.experimental import pallas as pl
from jax.experimental.pallas import tpu as pltpu


_VMEM_TILE_BUDGET = 24 * 1024 * 1024  # bytes for double-buffered in+out slabs
_VMEM_LIMIT = 48 * 1024 * 1024        # scoped VMEM limit: safe on v5e/v6e/v7x


def cam_kernel(x_ref, o_ref):
    # x_ref / o_ref block: (B_TILE, c, hw_pad)
    f = x_ref[...]

    # gram[b] = f[b] @ f[b]^T  -> (B_TILE, c, c); bf16/f32 operands, f32 accumulation.
    gram = jnp.einsum(
        "bck,bdk->bcd", f, f, preferred_element_type=jnp.float32
    )

    # exp + divide-by-total-sum, per batch element.  Subtracting the per-batch
    # max before exp is exactly invariant under this normalization and keeps
    # exp finite for realistic activation scales.
    m = jnp.max(gram, axis=(1, 2), keepdims=True)
    e = jnp.exp(gram - m)
    denom = jnp.sum(e, axis=(1, 2), keepdims=True)
    attn = e * pl.reciprocal(denom, approx=False)  # EUP recip + cheap VALU mul

    # out[b] = attn[b] @ f[b]  -> (B_TILE, c, hw_pad); keep f in its own dtype.
    out = jnp.einsum(
        "bcd,bdk->bck", attn.astype(f.dtype), f, preferred_element_type=jnp.float32
    )
    o_ref[...] = out.astype(o_ref.dtype)


def _choose_b_tile(b, c, hw_p, itemsize):
    """Largest batch tile whose double-buffered in+out slabs fit the VMEM budget."""
    per_b = 2 * 2 * c * hw_p * itemsize + 4 * c * c * 4  # slabs + (c,c) f32 temps
    bt = max(1, min(b, _VMEM_TILE_BUDGET // max(per_b, 1)))
    if b >= 2:
        bt = min(bt, (b + 1) // 2)  # keep >= 2 grid steps so both v7x TCs get work
    while b % bt != 0:              # keep tiles exact (no ragged last block)
        bt -= 1
    return bt


def cam_pallas(img):
    b, c, h, w = img.shape
    hw = h * w
    hw_p = ((hw + 127) // 128) * 128  # lane-dense last dim

    x = img.reshape(b, c, hw)
    if hw_p != hw:
        # zero-padding hw is numerically exact for this op
        x = jnp.pad(x, ((0, 0), (0, 0), (0, hw_p - hw)))

    bt = _choose_b_tile(b, c, hw_p, jnp.dtype(img.dtype).itemsize)
    grid = (b // bt,)

    out = pl.pallas_call(
        cam_kernel,
        out_shape=jax.ShapeDtypeStruct((b, c, hw_p), img.dtype),
        grid=grid,
        in_specs=[pl.BlockSpec((bt, c, hw_p), lambda i: (i, 0, 0))],
        out_specs=pl.BlockSpec((bt, c, hw_p), lambda i: (i, 0, 0)),
        compiler_params=pltpu.CompilerParams(
            dimension_semantics=("parallel",),
            vmem_limit_bytes=_VMEM_LIMIT,
        ),
    )(x)

    if hw_p != hw:
        out = out[:, :, :hw]
    return out.reshape(b, c, h, w)


def cam_reference(img):
    # pure-JAX reference, mirrors the PyTorch forward exactly
    b, c, h, w = img.shape
    f = img.reshape(b, c, h * w).astype(jnp.float32)
    temp = jnp.einsum("bck,bdk->bcd", f, f)
    temp = jnp.exp(temp)
    temp = temp / jnp.sum(temp, axis=(1, 2), keepdims=True)
    out = jnp.einsum("bcd,bdk->bck", temp, f)
    return out.reshape(b, c, h, w).astype(img.dtype)


if __name__ == "__main__":
    key = jax.random.PRNGKey(0)
    b, c, h, w = 2, 4, 16, 16
    # small scale keeps exp(f @ f^T) comfortably finite for the synthetic test
    x = jax.random.normal(key, (b, c, h, w), dtype=jnp.float32) * 0.05

    y = cam_pallas(x)
    jax.block_until_ready(y)

    y_ref = cam_reference(x)
    assert y.shape == (b, c, h, w)
    assert jnp.allclose(y, y_ref, atol=1e-5, rtol=1e-5), "mismatch vs reference"

    print("KERNEL_OK")
</pallas_src>

<mosaic_0001>
module attributes {stable_mosaic.version = 11 : i64} {
  func.func @cam_kernel(%arg0: i32, %arg1: memref<1x4x256xf32, #tpu.memory_space<vmem>>, %arg2: memref<1x4x256xf32, #tpu.memory_space<vmem>>) attributes {dimension_semantics = [#tpu.dimension_semantics<parallel>], iteration_bounds = array<i64: 2>, scalar_prefetch = 0 : i64, scratch_operands = 0 : i64, tpu.core_type = #tpu.core_type<tc>, window_params = [{transform_indices = @transform_0, window_bounds = array<i64: 1, 4, 256>}, {transform_indices = @transform_1, window_bounds = array<i64: 1, 4, 256>}]} {
    %c0 = arith.constant 0 : index
    %c0_0 = arith.constant 0 : index
    %c0_1 = arith.constant 0 : index
    %0 = vector.load %arg1[%c0, %c0_0, %c0_1] : memref<1x4x256xf32, #tpu.memory_space<vmem>>, vector<1x4x256xf32>
    "tpu.trace_start"() <{level = 10 : i32, message = "bck,bdk->bcd"}> : () -> ()
    %cst = arith.constant dense<0.000000e+00> : vector<1x4x4xf32>
    %1 = tpu.matmul %0, %0, %cst {dimension_numbers = #tpu.dot_dimension_numbers<[2], [2], [1], [1], [0, 0, 0, 1, 1, 1], [0], [0]>} : vector<1x4x256xf32>, vector<1x4x256xf32>, vector<1x4x4xf32> -> vector<1x4x4xf32>
    "tpu.trace_stop"() : () -> ()
    %cst_2 = arith.constant dense<0xFF800000> : vector<1xf32>
    %2 = vector.multi_reduction <maximumf>, %1, %cst_2 [1, 2] : vector<1x4x4xf32> to vector<1xf32>
    %3 = vector.shape_cast %2 : vector<1xf32> to vector<1x1x1xf32>
    %4 = vector.broadcast %3 : vector<1x1x1xf32> to vector<1x4x4xf32>
    %5 = arith.subf %1, %4 : vector<1x4x4xf32>
    %6 = math.exp %5 : vector<1x4x4xf32>
    %cst_3 = arith.constant dense<0.000000e+00> : vector<1xf32>
    %7 = vector.multi_reduction <add>, %6, %cst_3 [1, 2] : vector<1x4x4xf32> to vector<1xf32>
    %8 = vector.shape_cast %7 : vector<1xf32> to vector<1x1x1xf32>
    %9 = tpu.reciprocal %8 : vector<1x1x1xf32> -> vector<1x1x1xf32>
    %10 = vector.broadcast %9 : vector<1x1x1xf32> to vector<1x4x4xf32>
    %11 = arith.mulf %6, %10 : vector<1x4x4xf32>
    "tpu.trace_start"() <{level = 10 : i32, message = "bcd,bdk->bck"}> : () -> ()
    %cst_4 = arith.constant dense<0.000000e+00> : vector<1x4x256xf32>
    %12 = tpu.matmul %11, %0, %cst_4 {dimension_numbers = #tpu.dot_dimension_numbers<[2], [1], [1], [2], [0, 0, 0, 1, 1, 2], [0], [0]>} : vector<1x4x4xf32>, vector<1x4x256xf32>, vector<1x4x256xf32> -> vector<1x4x256xf32>
    "tpu.trace_stop"() : () -> ()
    %c0_5 = arith.constant 0 : index
    %c0_6 = arith.constant 0 : index
    %c0_7 = arith.constant 0 : index
    %13 = vector.load %arg2[%c0_5, %c0_6, %c0_7] : memref<1x4x256xf32, #tpu.memory_space<vmem>>, vector<1x4x256xf32>
    tpu.vector_store %arg2[%c0_5, %c0_6, %c0_7], %12 {strides = array<i32>} : memref<1x4x256xf32, #tpu.memory_space<vmem>>, vector<1x4x256xf32>,
    return
  }
  func.func @transform_0(%arg0: i32) -> (i32, i32, i32) {
    %c0_i32 = arith.constant 0 : i32
    %c0_i32_0 = arith.constant 0 : i32
    %c0_i32_1 = arith.constant 0 : i32
    return %arg0, %c0_i32, %c0_i32_0 : i32, i32, i32
  }
  func.func @transform_1(%arg0: i32) -> (i32, i32, i32) {
    %c0_i32 = arith.constant 0 : i32
    %c0_i32_0 = arith.constant 0 : i32
    %c0_i32_1 = arith.constant 0 : i32
    return %arg0, %c0_i32, %c0_i32_0 : i32, i32, i32
  }
}

</mosaic_0001>

<llo_original>
// kernel: tpu_custom_call.1
$region0: #{tpu_custom_call.1}
  #allocation0 [shape = 'u32[]', space=smem, size = 0x4, offset = 0x4, fixed_abs, tag = 'smem constant byte address 0x4 - core index']
  #allocation1 [shape = 'u32[144,128]{1,0:T(1,128)}', space=vmem, size = 0x12000, scoped, tag = 'internal scratch']
  %s0 = inlined_call_operand.hbm [shape: f32[2,4,256], index: 0, kind: input, shape index: {}]
  %s1 = inlined_call_operand.hbm [shape: f32[2,4,256], index: 1, kind: output, shape index: {}]
  %s2 = sld [smem:[#allocation0]]
  $region41: #{tpu_custom_call.1} parent=0
    _
  %s4 = ssub.s32 1, %s2
  %s5 = scalar_select 0, %s4, %s2
  $region1: #{tpu_custom_call.1} parent=0
    #allocation2 [shape = 'u8[8192]{0}', space=vmem, size = 0x2000, scoped, tag = 'input window, operand 0']
    #allocation3 [shape = 's32[2]{0}', space=sflag, size = 0x8, scoped, tag = 'scoped memory for tpu_custom_call.1']
    #allocation4 [shape = 's32[2]{0}', space=sflag, size = 0x8, scoped, tag = 'scoped memory for tpu_custom_call.1']
    #allocation5 [shape = 'u8[8192]{0}', space=vmem, size = 0x2000, scoped, tag = 'output window, operand 0']
    %6 = vsyncpa [#allocation3], 0
    %s7 = scalar_lea.sflag [#allocation3], 1
    %8 = vsyncpa %s7, 0
    %9 = vsyncpa [#allocation4], 0
    %s10 = scalar_lea.sflag [#allocation4], 1
    %11 = vsyncpa %s10, 0
    loop: start=0, step=1, limit=4
    $region2: #{tpu_custom_call.1} parent=1 // loop_pre_header
      _
    $region3: #{tpu_custom_call.1} parent=1 // loop_header
      %s13 = sphi 0, %s17
      %p14 = scmp.ge.s32.totalorder %s13, 4
      %s23 = sphi 0, %s25
      %s26 = sphi 0, %s23
      %s27 = sphi 0, %s26
      %s43 = sphi 0, %s27
      %s49 = sphi 0, %s51
      %s52 = sphi 0, %s49
      %s53 = sphi 0, %s52
      %s69 = sphi 0, %s53
    $region4: #{tpu_custom_call.1} parent=1 // loop_header_branch
      %16 = sbr.rel (%p14) target = $region8
    $region5: #{tpu_custom_call.1} parent=1 // loop_body
      %s18 = ssub.s32 %s13, 1
      %s19 = ssub.s32 %s13, 2
      %s20 = sadd.s32 %s13, 1
      %s21 = ssub.s32 %s13, %s20
      %p22 = scmp.eq.s32.totalorder %s21, 0
      %s24 = sadd.s32 %s23, 1
      %s25 = scalar_select %p22, %s23, %s24
      %p28 = pneg %p22
      %p29 = scmp.eq.s32.totalorder %s13, 1
      %p30 = por %p28, %p29
      %p31 = scmp.ne.s32.totalorder %s23, %s26
      %p32 = scmp.eq.s32.totalorder %s13, 0
      %p33 = por %p31, %p32
      %p34 = scmp.ne.s32.totalorder %s23, %s26
      %p35 = scmp.eq.s32.totalorder %s18, 1
      %p36 = por %p34, %p35
      %p37 = scmp.ne.s32.totalorder %s26, %s27
      %p38 = scmp.eq.s32.totalorder %s18, 0
      %p39 = por %p37, %p38
      %p40 = scmp.ne.s32.totalorder %s26, %s27
      %p41 = scmp.eq.s32.totalorder %s19, 1
      %p42 = por %p40, %p41
      %p44 = scmp.ne.s32.totalorder %s27, %s43
      %p45 = scmp.eq.s32.totalorder %s19, 0
      %p46 = por %p44, %p45
      %s47 = ssub.s32 %s13, %s20
      %p48 = scmp.eq.s32.totalorder %s47, 0
      %s50 = sadd.s32 %s49, 1
      %s51 = scalar_select %p48, %s49, %s50
      %p54 = pneg %p48
      %p55 = scmp.eq.s32.totalorder %s13, 1
      %p56 = por %p54, %p55
      %p57 = scmp.ne.s32.totalorder %s49, %s52
      %p58 = scmp.eq.s32.totalorder %s13, 0
      %p59 = por %p57, %p58
      %p60 = scmp.ne.s32.totalorder %s49, %s52
      %p61 = scmp.eq.s32.totalorder %s18, 1
      %p62 = por %p60, %p61
      %p63 = scmp.ne.s32.totalorder %s52, %s53
      %p64 = scmp.eq.s32.totalorder %s18, 0
      %p65 = por %p63, %p64
      %p66 = scmp.ne.s32.totalorder %s52, %s53
      %p67 = scmp.eq.s32.totalorder %s19, 1
      %p68 = por %p66, %p67
      %p70 = scmp.ne.s32.totalorder %s53, %s69
      %p71 = scmp.eq.s32.totalorder %s19, 0
      %p72 = por %p70, %p71
      %p73 = scmp.le.s32.totalorder 1, %s13
      %p74 = scmp.lt.s32.totalorder %s13, 3
      %p75 = pnand %p73, %p74
      %p76 = pneg %p75
      // Predicated region
      $region9: #{tpu_custom_call.1} parent=5 // pred_check
        _
      $region10: #{tpu_custom_call.1} parent=5 // pred_check_branch
        %78 = sbr.rel (%p75) target = $region12
      $region11: #{tpu_custom_call.1} parent=5 // pred_region
        %s79 = ssub.s32 %s13, 1
      $region12: #{tpu_custom_call.1} parent=5 // pred_fallthru
        _
      %p80 = scmp.lt.s32.totalorder %s13, 2
      // Predicated region
      $region13: #{tpu_custom_call.1} parent=5 // pred_check
        %p81 = pneg %p80
      $region14: #{tpu_custom_call.1} parent=5 // pred_check_branch
        %83 = sbr.rel (%p81) target = $region16
      $region15: #{tpu_custom_call.1} parent=5 // pred_region
        // Predicated region
        $region17: #{tpu_custom_call.1} parent=15 // pred_check
          %p84 = pneg %p33
        $region18: #{tpu_custom_call.1} parent=15 // pred_check_branch
          %86 = sbr.rel (%p84) target = $region20
        $region19: #{tpu_custom_call.1} parent=15 // pred_region
          %s87 = sand.u32 %s23, 1
          %s88 = scalar_lea.sflag [#allocation3], %s87
          %s89 = sand.u32 %s23, 1
          %s90 = smul.addr %s89, 8
          %s91 = scalar_lea.vmem [#allocation2], %s90
          %s93 = ssub.s32 128, 128
          %94 = vsyncadd %s88, %s93
          %s95 = smul.addr %s13, 2
          %s96 = smul.addr %s95, 64
          %s97 = scalar_lea.hbm %s0, %s96
          %s99 = sshll.u32 %s91, 4
          %s100 = int_to_ptr.vmem [resolvable:$true] %s99
          %102 = dma.hbm_to_vmem [thread:$0]  %s97, 128, %s100, %s88
        $region20: #{tpu_custom_call.1} parent=15 // pred_fallthru
          _
      $region16: #{tpu_custom_call.1} parent=5 // pred_fallthru
        _
      %p103 = scmp.le.s32.totalorder 1, %s13
      %p104 = scmp.lt.s32.totalorder %s13, 3
      %p105 = pnand %p103, %p104
      %p106 = pneg %p105
      // Predicated region
      $region21: #{tpu_custom_call.1} parent=5 // pred_check
        _
      $region22: #{tpu_custom_call.1} parent=5 // pred_check_branch
        %108 = sbr.rel (%p105) target = $region24
      $region23: #{tpu_custom_call.1} parent=5 // pred_region
        %s109 = ssub.s32 %s13, 1
        %s110 = sand.u32 %s26, 1
        %s111 = scalar_lea.sflag [#allocation3], %s110
        %s112 = sand.u32 %s26, 1
        %s113 = smul.addr %s112, 8
        %s114 = scalar_lea.vmem [#allocation2], %s113
        // Predicated region
        $region25: #{tpu_custom_call.1} parent=23 // pred_check
          %p115 = pneg %p39
        $region26: #{tpu_custom_call.1} parent=23 // pred_check_branch
          %117 = sbr.rel (%p115) target = $region28
        $region27: #{tpu_custom_call.1} parent=23 // pred_region
          %118 = dma.done %s111, 128
        $region28: #{tpu_custom_call.1} parent=23 // pred_fallthru
          _
        %s119 = sand.u32 %s26, 1
        %s120 = scalar_lea.sflag [#allocation3], %s119
        %s121 = sand.u32 %s26, 1
        %s122 = smul.addr %s121, 8
        %s123 = scalar_lea.vmem [#allocation2], %s122
        %p124 = pneg %p39
        %p125 = pneg %p36
        %p126 = pneg %p65
        %p127 = pneg %p62
        %s128 = sand.u32 %s52, 1
        %s129 = scalar_lea.sflag [#allocation4], %s128
        %s130 = sand.u32 %s52, 1
        %s131 = smul.addr %s130, 8
        %s132 = scalar_lea.vmem [#allocation5], %s131
        %v133 = vld [vmem:[%s114] sm:$0xff]
        %v135 = vcombine.high %v133, %v133
        %137 = vmatprep.subr.mxu0 %v135
        %138 = vmatpush1.xpose.msra.mxu0 %v133
        %139 = vmatprep.subr.mxu0 0.0
        %140 = vmatpush1.xpose.msra.mxu0 0.0
        %141 = vmatprep.subr.mxu0 0.0
        %142 = vmatpush1.xpose.msra.mxu0 0.0
        %143 = vmatprep.subr.mxu0 0.0
        %144 = vmatpush1.xpose.msra.mxu0 0.0
        %145 = vmatprep.subr.mxu0 0.0
        %146 = vmatpush1.xpose.msra.mxu0 0.0
        %147 = vmatprep.subr.mxu0 0.0
        %148 = vmatpush1.xpose.msra.mxu0 0.0
        %149 = vmatprep.subr.mxu0 0.0
        %150 = vmatpush1.xpose.msra.mxu0 0.0
        %151 = vmatprep.subr.mxu0 0.0
        %152 = vmatpush1.xpose.msra.mxu0 0.0
        %153 = vmatprep.subr.mxu0 0.0
        %154 = vmatpush1.xpose.msra.mxu0 0.0
        %155 = vmatprep.subr.mxu0 0.0
        %156 = vmatpush1.xpose.msra.mxu0 0.0
        %157 = vmatprep.subr.mxu0 0.0
        %158 = vmatpush1.xpose.msra.mxu0 0.0
        %159 = vmatprep.subr.mxu0 0.0
        %160 = vmatpush1.xpose.msra.mxu0 0.0
        %161 = vmatprep.subr.mxu0 0.0
        %162 = vmatpush1.xpose.msra.mxu0 0.0
        %163 = vmatprep.subr.mxu0 0.0
        %164 = vmatpush1.xpose.msra.mxu0 0.0
        %165 = vmatprep.subr.mxu0 0.0
        %166 = vmatpush1.xpose.msra.mxu0 0.0
        %167 = vmatprep.subr.mxu0 0.0
        %168 = vmatpush1.xpose.msra.mxu0 0.0
        %169 = vmatprep.subr.mxu0 0.0
        %170 = vmatpush1.xpose.msra.mxu0 0.0
        %171 = vmatprep.subr.mxu0 0.0
        %172 = vmatpush1.xpose.msra.mxu0 0.0
        %173 = vmatprep.subr.mxu0 0.0
        %174 = vmatpush1.xpose.msra.mxu0 0.0
        %175 = vmatprep.subr.mxu0 0.0
        %176 = vmatpush1.xpose.msra.mxu0 0.0
        %177 = vmatprep.subr.mxu0 0.0
        %178 = vmatpush1.xpose.msra.mxu0 0.0
        %179 = vmatprep.subr.mxu0 0.0
        %180 = vmatpush1.xpose.msra.mxu0 0.0
        %181 = vmatprep.subr.mxu0 0.0
        %182 = vmatpush1.xpose.msra.mxu0 0.0
        %183 = vmatprep.subr.mxu0 0.0
        %184 = vmatpush1.xpose.msra.mxu0 0.0
        %185 = vmatprep.subr.mxu0 0.0
        %186 = vmatpush1.xpose.msra.mxu0 0.0
        %187 = vmatprep.subr.mxu0 0.0
        %188 = vmatpush1.xpose.msra.mxu0 0.0
        %189 = vmatprep.subr.mxu0 0.0
        %190 = vmatpush1.xpose.msra.mxu0 0.0
        %191 = vmatprep.subr.mxu0 0.0
        %192 = vmatpush1.xpose.msra.mxu0 0.0
        %193 = vmatprep.subr.mxu0 0.0
        %194 = vmatpush1.xpose.msra.mxu0 0.0
        %195 = vmatprep.subr.mxu0 0.0
        %196 = vmatpush1.xpose.msra.mxu0 0.0
        %197 = vmatprep.subr.mxu0 0.0
        %198 = vmatpush1.xpose.msra.mxu0 0.0
        %199 = vmatprep.subr.mxu0 0.0
        %200 = vmatpush1.xpose.msra.mxu0 0.0
        %201 = vmatprep.mubr.f32.mxu0 %v135
        %202 = vmatmul.mubr.f32.gmra.mrb[0].mxu0 %v133
        %v203 = vpop.f32.mrb[0].mxu0
        %v204 = vadd.f32 0.0, %v203
        %v205 = vpop.f32.mrb[0].mxu0
        %206 = vdwg.mxu0
        %vm207 = vcmask 27648
        %v208 = vsel %vm207, %v204, -inf
        %209 = vmax.xlane.f32.xlu0 %v208
        %v210 = vpop.xlane.xlu0 %209
        %v211 = vrot.slane %v210, 4
        %v212 = vmax.f32 %v210, %v211
        %v213 = vrot.slane %v212, 2
        %v214 = vmax.f32 %v212, %v213
        %v215 = vrot.slane %v214, 1
        %v216 = vmax.f32 %v214, %v215
        %v217 = vsub.f32 %v204, %v216
        %v218 = vmul.f32 %v217, 1.442695
        %v219 = vpow.pop %v218
        %v220 = vsel %vm207, %v219, 0.0
        %221 = vadd.xlane.f32.xlu0 %v220
        %v222 = vpop.xlane.xlu0 %221
        %v223 = vrot.slane %v222, 4
        %v224 = vadd.f32 %v222, %v223
        %v225 = vrot.slane %v224, 2
        %v226 = vadd.f32 %v224, %v225
        %v227 = vrot.slane %v226, 1
        %v228 = vadd.f32 %v226, %v227
        %v229 = vrcp.pop %v228
        %v230 = vmul.f32 %v219, %v229
        %vm231 = vcmask 31744
        %v233 = vsel %vm231, %v230, 0
        %vm235 = vcmask 1043456
        %v236 = vsel %vm235, %v133, 0
        %v238 = vsel %vm235, %v135, 0
        %240 = vmatprep.subr.mxu0 %v238
        %241 = vmatpush1.msra.mxu0 %v236
        %242 = vmatprep.subr.mxu0 0.0
        %243 = vmatpush1.msra.mxu0 0.0
        %244 = vmatprep.subr.mxu0 0.0
        %245 = vmatpush1.msra.mxu0 0.0
        %246 = vmatprep.subr.mxu0 0.0
        %247 = vmatpush1.msra.mxu0 0.0
        %248 = vmatprep.subr.mxu0 0.0
        %249 = vmatpush1.msra.mxu0 0.0
        %250 = vmatprep.subr.mxu0 0.0
        %251 = vmatpush1.msra.mxu0 0.0
        %252 = vmatprep.subr.mxu0 0.0
        %253 = vmatpush1.msra.mxu0 0.0
        %254 = vmatprep.subr.mxu0 0.0
        %255 = vmatpush1.msra.mxu0 0.0
        %256 = vmatprep.subr.mxu0 0.0
        %257 = vmatpush1.msra.mxu0 0.0
        %258 = vmatprep.subr.mxu0 0.0
        %259 = vmatpush1.msra.mxu0 0.0
        %260 = vmatprep.subr.mxu0 0.0
        %261 = vmatpush1.msra.mxu0 0.0
        %262 = vmatprep.subr.mxu0 0.0
        %263 = vmatpush1.msra.mxu0 0.0
        %264 = vmatprep.subr.mxu0 0.0
        %265 = vmatpush1.msra.mxu0 0.0
        %266 = vmatprep.subr.mxu0 0.0
        %267 = vmatpush1.msra.mxu0 0.0
        %268 = vmatprep.subr.mxu0 0.0
        %269 = vmatpush1.msra.mxu0 0.0
        %270 = vmatprep.subr.mxu0 0.0
        %271 = vmatpush1.msra.mxu0 0.0
        %272 = vmatprep.subr.mxu0 0.0
        %273 = vmatpush1.msra.mxu0 0.0
        %274 = vmatprep.subr.mxu0 0.0
        %275 = vmatpush1.msra.mxu0 0.0
        %276 = vmatprep.subr.mxu0 0.0
        %277 = vmatpush1.msra.mxu0 0.0
        %278 = vmatprep.subr.mxu0 0.0
        %279 = vmatpush1.msra.mxu0 0.0
        %280 = vmatprep.subr.mxu0 0.0
        %281 = vmatpush1.msra.mxu0 0.0
        %282 = vmatprep.subr.mxu0 0.0
        %283 = vmatpush1.msra.mxu0 0.0
        %284 = vmatprep.subr.mxu0 0.0
        %285 = vmatpush1.msra.mxu0 0.0
        %286 = vmatprep.subr.mxu0 0.0
        %287 = vmatpush1.msra.mxu0 0.0
        %288 = vmatprep.subr.mxu0 0.0
        %289 = vmatpush1.msra.mxu0 0.0
        %290 = vmatprep.subr.mxu0 0.0
        %291 = vmatpush1.msra.mxu0 0.0
        %292 = vmatprep.subr.mxu0 0.0
        %293 = vmatpush1.msra.mxu0 0.0
        %294 = vmatprep.subr.mxu0 0.0
        %295 = vmatpush1.msra.mxu0 0.0
        %296 = vmatprep.subr.mxu0 0.0
        %297 = vmatpush1.msra.mxu0 0.0
        %298 = vmatprep.subr.mxu0 0.0
        %299 = vmatpush1.msra.mxu0 0.0
        %300 = vmatprep.subr.mxu0 0.0
        %301 = vmatpush1.msra.mxu0 0.0
        %302 = vmatprep.subr.mxu0 0.0
        %303 = vmatpush1.msra.mxu0 0.0
        %304 = vmatprep.mubr.f32.mxu0 0.0
        %305 = vmatmul.mubr.f32.gmra.mrb[0].mxu0 %v233
        %v306 = vpop.f32.mrb[0].mxu0
        %v307 = vadd.f32 0.0, %v306
        %v308 = vpop.f32.mrb[0].mxu0
        %v309 = vadd.f32 0.0, %v308
        %310 = vdwg.mxu0
        %v313 = vcombine.low %v307, %v309
        %315 = vst [vmem:[%s132] sm:$0xff] %v313
        %s316 = sand.u32 %s52, 1
        %s317 = scalar_lea.sflag [#allocation4], %s316
        %s318 = sand.u32 %s52, 1
        %s319 = smul.addr %s318, 8
        %s320 = scalar_lea.vmem [#allocation5], %s319
        // Predicated region
        $region29: #{tpu_custom_call.1} parent=23 // pred_check
          %p321 = pneg %p62
        $region30: #{tpu_custom_call.1} parent=23 // pred_check_branch
          %323 = sbr.rel (%p321) target = $region32
        $region31: #{tpu_custom_call.1} parent=23 // pred_region
          %s325 = ssub.s32 128, 128
          %326 = vsyncadd %s317, %s325
          %s327 = smul.addr %s18, 2
          %s328 = smul.addr %s327, 64
          %s329 = scalar_lea.hbm %s1, %s328
          %s331 = sshll.u32 %s320, 4
          %s332 = int_to_ptr.vmem [resolvable:$true] %s331
          %334 = dma.vmem_to_hbm [thread:$0]  %s332, 128, %s329, %s317
        $region32: #{tpu_custom_call.1} parent=23 // pred_fallthru
          _
      $region24: #{tpu_custom_call.1} parent=5 // pred_fallthru
        _
      %p335 = scmp.le.s32.totalorder 2, %s13
      // Predicated region
      $region33: #{tpu_custom_call.1} parent=5 // pred_check
        %p336 = pneg %p335
      $region34: #{tpu_custom_call.1} parent=5 // pred_check_branch
        %338 = sbr.rel (%p336) target = $region36
      $region35: #{tpu_custom_call.1} parent=5 // pred_region
        %s339 = ssub.s32 %s13, 2
        // Predicated region
        $region37: #{tpu_custom_call.1} parent=35 // pred_check
          %p340 = pneg %p68
        $region38: #{tpu_custom_call.1} parent=35 // pred_check_branch
          %342 = sbr.rel (%p340) target = $region40
        $region39: #{tpu_custom_call.1} parent=35 // pred_region
          %s343 = sand.u32 %s53, 1
          %s344 = scalar_lea.sflag [#allocation4], %s343
          %s345 = sand.u32 %s53, 1
          %s346 = smul.addr %s345, 8
          %s347 = scalar_lea.vmem [#allocation5], %s346
          %348 = dma.done %s344, 128
        $region40: #{tpu_custom_call.1} parent=35 // pred_fallthru
          _
      $region36: #{tpu_custom_call.1} parent=5 // pred_fallthru
        _
    $region6: #{tpu_custom_call.1} parent=1 // loop_footer
      %s17 = sadd.s32 1, %s13
    $region7: #{tpu_custom_call.1} parent=1 // loop_footer_branch
      %12 = sbr.rel target = $region3
    $region8: #{tpu_custom_call.1} parent=1 // loop_exit
      _
    %349 = vsyncpa [#allocation3], 1
    %s350 = scalar_lea.sflag [#allocation3], 1
    %351 = vsyncpa %s350, 1
    %352 = vsyncpa [#allocation4], 1
    %s353 = scalar_lea.sflag [#allocation4], 1
    %354 = vsyncpa %s353, 1

</llo_original>
